<compile_context>
chip_gen: v7x
topology: tpu7x:2x2x1
jax: 0.10.0
libtpu: 0.0.40
codegen_flags: <defaults>
</compile_context>

<pallas_src>
import functools

import jax
import jax.numpy as jnp
from jax import lax
from jax.experimental import pallas as pl
from jax.experimental.pallas import tpu as pltpu


def _smoothness_kernel(x_ref, out_ref, *, H, W, w_h, w_v, w_d):
    i = pl.program_id(0)

    @pl.when(i == 0)
    def _init():
        out_ref[0, 0] = jnp.float32(0.0)

    x = x_ref[...]                        # (H, W), kept in the input dtype

    # Shifted neighbours via rotations; the wrap-around row/column gets zero
    # weight below, so every intermediate keeps the full (H, W) layout.
    x_w = jnp.roll(x, -1, axis=1)         # x[h,   w+1]
    x_h = jnp.roll(x, -1, axis=0)         # x[h+1, w  ]
    x_hw = jnp.roll(x_w, -1, axis=0)      # x[h+1, w+1]

    col_ok = lax.broadcasted_iota(jnp.int32, (H, W), 1) < (W - 1)
    row_ok = lax.broadcasted_iota(jnp.int32, (H, W), 0) < (H - 1)

    wh = jnp.where(col_ok, jnp.float32(w_h), jnp.float32(0.0))
    wv = jnp.where(row_ok, jnp.float32(w_v), jnp.float32(0.0))
    wd = jnp.where(col_ok & row_ok, jnp.float32(w_d), jnp.float32(0.0))

    t = (jnp.abs(x - x_w) * wh
         + jnp.abs(x - x_h) * wv
         + (jnp.abs(x - x_hw) + jnp.abs(x_h - x_w)) * wd)

    out_ref[0, 0] += jnp.sum(t)           # single cross-lane reduction, f32


def smoothness_loss(x):
    """x: (B, H, W) array (f32 or bf16). Returns scalar float32 loss."""
    B, H, W = x.shape
    # Per-term weights: 1/4 * 1/count, with the batch mean folded in, so the
    # per-image partial sums simply add up to the final loss.
    w_h = 0.25 / float(B * H * (W - 1))
    w_v = 0.25 / float(B * (H - 1) * W)
    w_d = 0.25 / float(B * (H - 1) * (W - 1))

    kernel = functools.partial(
        _smoothness_kernel, H=H, W=W, w_h=w_h, w_v=w_v, w_d=w_d)

    out = pl.pallas_call(
        kernel,
        out_shape=jax.ShapeDtypeStruct((1, 1), jnp.float32),
        grid=(B,),
        in_specs=[pl.BlockSpec((None, H, W), lambda i: (i, 0, 0))],
        out_specs=pl.BlockSpec((1, 1), lambda i: (0, 0),
                               memory_space=pltpu.MemorySpace.SMEM),
        compiler_params=pltpu.CompilerParams(
            dimension_semantics=("arbitrary",)),   # accumulation axis
    )(x)
    return out[0, 0]


def _reference(x):
    x = x.astype(jnp.float32)
    l1 = jnp.mean(jnp.abs(x[:, :, :-1] - x[:, :, 1:]))
    l2 = jnp.mean(jnp.abs(x[:, :-1, :] - x[:, 1:, :]))
    l3 = jnp.mean(jnp.abs(x[:, :-1, :-1] - x[:, 1:, 1:]))
    l4 = jnp.mean(jnp.abs(x[:, 1:, :-1] - x[:, :-1, 1:]))
    return (l1 + l2 + l3 + l4) / 4.0


if __name__ == "__main__":
    key = jax.random.PRNGKey(0)
    k1, k2 = jax.random.split(key)

    # Primary shape implied by the module (batch of single-channel patches).
    x1 = jax.random.normal(k1, (2, 16, 16), dtype=jnp.float32)
    # Second, non-square shape to exercise a multi-step grid accumulation.
    x2 = jax.random.normal(k2, (3, 24, 40), dtype=jnp.float32)

    for x in (x1, x2):
        out = jax.block_until_ready(smoothness_loss(x))
        ref = jax.block_until_ready(_reference(x))
        assert abs(float(out) - float(ref)) < 1e-4, (x.shape, float(out), float(ref))

    print("KERNEL_OK")
</pallas_src>

<mosaic_0001>
module attributes {stable_mosaic.version = 11 : i64} {
  func.func @_smoothness_kernel(%arg0: i32, %arg1: memref<1x16x16xf32, #tpu.memory_space<vmem>>, %arg2: memref<1x1xf32, #tpu.memory_space<smem>>) attributes {dimension_semantics = [#tpu.dimension_semantics<arbitrary>], iteration_bounds = array<i64: 2>, scalar_prefetch = 0 : i64, scratch_operands = 0 : i64, tpu.core_type = #tpu.core_type<tc>, window_params = [{transform_indices = @transform_0, window_bounds = array<i64: 1, 16, 16>}, {transform_indices = @transform_1, window_bounds = array<i64: 1, 1>}]} {
    %c0_i32 = arith.constant 0 : i32
    %0 = arith.cmpi eq, %arg0, %c0_i32 : i32
    %1 = arith.extui %0 : i1 to i32
    %c0_i32_0 = arith.constant 0 : i32
    %2 = arith.cmpi ne, %1, %c0_i32_0 : i32
    scf.if %2 {
      %cst_14 = arith.constant 0.000000e+00 : f32
      %c0_15 = arith.constant 0 : index
      %c0_16 = arith.constant 0 : index
      %51 = memref.load %arg2[%c0_15, %c0_16] : memref<1x1xf32, #tpu.memory_space<smem>>
      memref.store %cst_14, %arg2[%c0_15, %c0_16] : memref<1x1xf32, #tpu.memory_space<smem>>
    } else {
    }
    %c0 = arith.constant 0 : index
    %c0_1 = arith.constant 0 : index
    %c0_2 = arith.constant 0 : index
    %3 = vector.load %arg1[%c0, %c0_1, %c0_2] : memref<1x16x16xf32, #tpu.memory_space<vmem>>, vector<1x16x16xf32>
    %4 = vector.shape_cast %3 : vector<1x16x16xf32> to vector<16x16xf32>
    %5 = vector.extract_strided_slice %4 {offsets = [0, 1], sizes = [16, 15], strides = [1, 1]} : vector<16x16xf32> to vector<16x15xf32>
    %6 = vector.extract_strided_slice %4 {offsets = [0, 0], sizes = [16, 1], strides = [1, 1]} : vector<16x16xf32> to vector<16x1xf32>
    %7 = tpu.concatenate %5, %6 in 1 : vector<16x15xf32>, vector<16x1xf32> -> vector<16x16xf32>
    %8 = vector.extract_strided_slice %4 {offsets = [1, 0], sizes = [15, 16], strides = [1, 1]} : vector<16x16xf32> to vector<15x16xf32>
    %9 = vector.extract_strided_slice %4 {offsets = [0, 0], sizes = [1, 16], strides = [1, 1]} : vector<16x16xf32> to vector<1x16xf32>
    %10 = tpu.concatenate %8, %9 in 0 : vector<15x16xf32>, vector<1x16xf32> -> vector<16x16xf32>
    %11 = vector.extract_strided_slice %7 {offsets = [1, 0], sizes = [15, 16], strides = [1, 1]} : vector<16x16xf32> to vector<15x16xf32>
    %12 = vector.extract_strided_slice %7 {offsets = [0, 0], sizes = [1, 16], strides = [1, 1]} : vector<16x16xf32> to vector<1x16xf32>
    %13 = tpu.concatenate %11, %12 in 0 : vector<15x16xf32>, vector<1x16xf32> -> vector<16x16xf32>
    %14 = tpu.iota {dimensions = array<i32: 1>} : vector<16x16xi32>
    %c15_i32 = arith.constant 15 : i32
    %15 = vector.broadcast %c15_i32 : i32 to vector<16x16xi32>
    %16 = arith.cmpi slt, %14, %15 : vector<16x16xi32>
    %17 = tpu.iota {dimensions = array<i32: 0>} : vector<16x16xi32>
    %c15_i32_3 = arith.constant 15 : i32
    %18 = vector.broadcast %c15_i32_3 : i32 to vector<16x16xi32>
    %19 = arith.cmpi slt, %17, %18 : vector<16x16xi32>
    %cst = arith.constant 5.2083336E-4 : f32
    %cst_4 = arith.constant 0.000000e+00 : f32
    %20 = vector.broadcast %cst : f32 to vector<16x16xf32>
    %21 = vector.broadcast %cst_4 : f32 to vector<16x16xf32>
    %22 = arith.select %16, %20, %21 : vector<16x16xi1>, vector<16x16xf32>
    %cst_5 = arith.constant 5.2083336E-4 : f32
    %cst_6 = arith.constant 0.000000e+00 : f32
    %23 = vector.broadcast %cst_5 : f32 to vector<16x16xf32>
    %24 = vector.broadcast %cst_6 : f32 to vector<16x16xf32>
    %25 = arith.select %19, %23, %24 : vector<16x16xi1>, vector<16x16xf32>
    %26 = arith.andi %16, %19 : vector<16x16xi1>
    %cst_7 = arith.constant 5.55555569E-4 : f32
    %cst_8 = arith.constant 0.000000e+00 : f32
    %27 = vector.broadcast %cst_7 : f32 to vector<16x16xf32>
    %28 = vector.broadcast %cst_8 : f32 to vector<16x16xf32>
    %29 = arith.select %26, %27, %28 : vector<16x16xi1>, vector<16x16xf32>
    %30 = arith.subf %4, %7 : vector<16x16xf32>
    %31 = math.absf %30 : vector<16x16xf32>
    %32 = arith.mulf %31, %22 : vector<16x16xf32>
    %33 = arith.subf %4, %10 : vector<16x16xf32>
    %34 = math.absf %33 : vector<16x16xf32>
    %35 = arith.mulf %34, %25 : vector<16x16xf32>
    %36 = arith.addf %32, %35 : vector<16x16xf32>
    %37 = arith.subf %4, %13 : vector<16x16xf32>
    %38 = math.absf %37 : vector<16x16xf32>
    %39 = arith.subf %10, %7 : vector<16x16xf32>
    %40 = math.absf %39 : vector<16x16xf32>
    %41 = arith.addf %38, %40 : vector<16x16xf32>
    %42 = arith.mulf %41, %29 : vector<16x16xf32>
    %43 = arith.addf %36, %42 : vector<16x16xf32>
    %c0_9 = arith.constant 0 : index
    %c0_10 = arith.constant 0 : index
    %44 = memref.load %arg2[%c0_9, %c0_10] : memref<1x1xf32, #tpu.memory_space<smem>>
    %45 = vector.shape_cast %43 : vector<16x16xf32> to vector<1x16x16xf32>
    %cst_11 = arith.constant dense<0.000000e+00> : vector<1xf32>
    %46 = vector.multi_reduction <add>, %45, %cst_11 [1, 2] : vector<1x16x16xf32> to vector<1xf32>
    %47 = vector.shape_cast %46 : vector<1xf32> to vector<1x1x1xf32>
    %48 = vector.extract %47[0, 0, 0] : f32 from vector<1x1x1xf32>
    %49 = arith.addf %44, %48 : f32
    %c0_12 = arith.constant 0 : index
    %c0_13 = arith.constant 0 : index
    %50 = memref.load %arg2[%c0_12, %c0_13] : memref<1x1xf32, #tpu.memory_space<smem>>
    memref.store %49, %arg2[%c0_12, %c0_13] : memref<1x1xf32, #tpu.memory_space<smem>>
    return
  }
  func.func @transform_0(%arg0: i32) -> (i32, i32, i32) {
    %c0_i32 = arith.constant 0 : i32
    %c0_i32_0 = arith.constant 0 : i32
    %c0_i32_1 = arith.constant 0 : i32
    return %arg0, %c0_i32, %c0_i32_0 : i32, i32, i32
  }
  func.func @transform_1(%arg0: i32) -> (i32, i32) {
    %c0_i32 = arith.constant 0 : i32
    %c0_i32_0 = arith.constant 0 : i32
    %c0_i32_1 = arith.constant 0 : i32
    return %c0_i32, %c0_i32_0 : i32, i32
  }
}

</mosaic_0001>

<llo_original>
// kernel: tpu_custom_call.1
$region0: #{tpu_custom_call.1}
  #allocation0 [shape = 'u32[]', space=smem, size = 0x4, offset = 0x4, fixed_abs, tag = 'smem constant byte address 0x4 - core index']
  #allocation1 [shape = 'u32[144,128]{1,0:T(1,128)}', space=vmem, size = 0x12000, scoped, tag = 'internal scratch']
  %s0 = inlined_call_operand.hbm [shape: f32[2,16,16], index: 0, kind: input, shape index: {}]
  %s1 = inlined_call_operand.hbm [shape: f32[1,1], index: 1, kind: output, shape index: {}]
  %s2 = sld [smem:[#allocation0]]
  $region45: #{tpu_custom_call.1} parent=0
    _
  %s4 = ssub.s32 1, %s2
  %s5 = scalar_select 0, %s4, %s2
  $region1: #{tpu_custom_call.1} parent=0
    #allocation2 [shape = 'u8[16384]{0}', space=vmem, size = 0x4000, scoped, tag = 'input window, operand 0']
    #allocation3 [shape = 's32[2]{0}', space=sflag, size = 0x8, scoped, tag = 'scoped memory for tpu_custom_call.1']
    #allocation4 [shape = 's32[2]{0}', space=sflag, size = 0x8, scoped, tag = 'scoped memory for tpu_custom_call.1']
    #allocation5 [shape = 'u8[512]{0}', space=smem, size = 0x200, scoped, tag = 'output window, operand 0, single buffered']
    %6 = vsyncpa [#allocation3], 0
    %s7 = scalar_lea.sflag [#allocation3], 1
    %8 = vsyncpa %s7, 0
    %9 = vsyncpa [#allocation4], 0
    loop: start=0, step=1, limit=4
    $region2: #{tpu_custom_call.1} parent=1 // loop_pre_header
      _
    $region3: #{tpu_custom_call.1} parent=1 // loop_header
      %s11 = sphi 0, %s15
      %p12 = scmp.ge.s32.totalorder %s11, 4
      %s21 = sphi 0, %s23
      %s24 = sphi 0, %s21
      %s25 = sphi 0, %s24
      %s41 = sphi 0, %s25
      %s45 = sphi 0, %s45
      %s47 = sphi 0, %s45
      %s48 = sphi 0, %s47
      %s62 = sphi 0, %s48
    $region4: #{tpu_custom_call.1} parent=1 // loop_header_branch
      %14 = sbr.rel (%p12) target = $region8
    $region5: #{tpu_custom_call.1} parent=1 // loop_body
      %s16 = ssub.s32 %s11, 1
      %s17 = ssub.s32 %s11, 2
      %s18 = sadd.s32 %s11, 1
      %s19 = ssub.s32 %s11, %s18
      %p20 = scmp.eq.s32.totalorder %s19, 0
      %s22 = sadd.s32 %s21, 1
      %s23 = scalar_select %p20, %s21, %s22
      %p26 = pneg %p20
      %p27 = scmp.eq.s32.totalorder %s11, 1
      %p28 = por %p26, %p27
      %p29 = scmp.ne.s32.totalorder %s21, %s24
      %p30 = scmp.eq.s32.totalorder %s11, 0
      %p31 = por %p29, %p30
      %p32 = scmp.ne.s32.totalorder %s21, %s24
      %p33 = scmp.eq.s32.totalorder %s16, 1
      %p34 = por %p32, %p33
      %p35 = scmp.ne.s32.totalorder %s24, %s25
      %p36 = scmp.eq.s32.totalorder %s16, 0
      %p37 = por %p35, %p36
      %p38 = scmp.ne.s32.totalorder %s24, %s25
      %p39 = scmp.eq.s32.totalorder %s17, 1
      %p40 = por %p38, %p39
      %p42 = scmp.ne.s32.totalorder %s25, %s41
      %p43 = scmp.eq.s32.totalorder %s17, 0
      %p44 = por %p42, %p43
      %s46 = sadd.s32 %s45, 1
      %p49 = scmp.eq.s32.totalorder %s11, 1
      %p50 = scmp.ne.s32.totalorder %s45, %s47
      %p51 = scmp.eq.s32.totalorder %s11, 0
      %p52 = por %p50, %p51
      %p53 = scmp.ne.s32.totalorder %s45, %s47
      %p54 = scmp.eq.s32.totalorder %s16, 1
      %p55 = por %p53, %p54
      %p56 = scmp.ne.s32.totalorder %s47, %s48
      %p57 = scmp.eq.s32.totalorder %s16, 0
      %p58 = por %p56, %p57
      %p59 = scmp.ne.s32.totalorder %s47, %s48
      %p60 = scmp.eq.s32.totalorder %s17, 1
      %p61 = por %p59, %p60
      %p63 = scmp.ne.s32.totalorder %s48, %s62
      %p64 = scmp.eq.s32.totalorder %s17, 0
      %p65 = por %p63, %p64
      %p66 = scmp.le.s32.totalorder 1, %s11
      %p67 = scmp.lt.s32.totalorder %s11, 3
      %p68 = pnand %p66, %p67
      %p69 = pneg %p68
      // Predicated region
      $region9: #{tpu_custom_call.1} parent=5 // pred_check
        _
      $region10: #{tpu_custom_call.1} parent=5 // pred_check_branch
        %71 = sbr.rel (%p68) target = $region12
      $region11: #{tpu_custom_call.1} parent=5 // pred_region
        %s72 = ssub.s32 %s11, 1
      $region12: #{tpu_custom_call.1} parent=5 // pred_fallthru
        _
      %p73 = scmp.lt.s32.totalorder %s11, 2
      // Predicated region
      $region13: #{tpu_custom_call.1} parent=5 // pred_check
        %p74 = pneg %p73
      $region14: #{tpu_custom_call.1} parent=5 // pred_check_branch
        %76 = sbr.rel (%p74) target = $region16
      $region15: #{tpu_custom_call.1} parent=5 // pred_region
        // Predicated region
        $region17: #{tpu_custom_call.1} parent=15 // pred_check
          %p77 = pneg %p31
        $region18: #{tpu_custom_call.1} parent=15 // pred_check_branch
          %79 = sbr.rel (%p77) target = $region20
        $region19: #{tpu_custom_call.1} parent=15 // pred_region
          %s80 = sand.u32 %s21, 1
          %s81 = scalar_lea.sflag [#allocation3], %s80
          %s82 = sand.u32 %s21, 1
          %s83 = smul.addr %s82, 16
          %s84 = scalar_lea.vmem [#allocation2], %s83
          %s86 = ssub.s32 256, 256
          %87 = vsyncadd %s81, %s86
          %s88 = smul.addr %s11, 2
          %s89 = smul.addr %s88, 128
          %s90 = scalar_lea.hbm %s0, %s89
          %s91 = sshll.u32 %s84, 4
          %s92 = int_to_ptr.vmem [resolvable:$true] %s91
          %97 = dma.hbm_to_vmem [thread:$0]  %s90, 256, %s92, %s81, 128, 128, 8
        $region20: #{tpu_custom_call.1} parent=15 // pred_fallthru
          _
      $region16: #{tpu_custom_call.1} parent=5 // pred_fallthru
        _
      %p98 = scmp.le.s32.totalorder 1, %s11
      %p99 = scmp.lt.s32.totalorder %s11, 3
      %p100 = pnand %p98, %p99
      %p101 = pneg %p100
      // Predicated region
      $region21: #{tpu_custom_call.1} parent=5 // pred_check
        _
      $region22: #{tpu_custom_call.1} parent=5 // pred_check_branch
        %103 = sbr.rel (%p100) target = $region24
      $region23: #{tpu_custom_call.1} parent=5 // pred_region
        %s104 = ssub.s32 %s11, 1
        %s105 = sand.u32 %s24, 1
        %s106 = scalar_lea.sflag [#allocation3], %s105
        %s107 = sand.u32 %s24, 1
        %s108 = smul.addr %s107, 16
        %s109 = scalar_lea.vmem [#allocation2], %s108
        // Predicated region
        $region25: #{tpu_custom_call.1} parent=23 // pred_check
          %p110 = pneg %p37
        $region26: #{tpu_custom_call.1} parent=23 // pred_check_branch
          %112 = sbr.rel (%p110) target = $region28
        $region27: #{tpu_custom_call.1} parent=23 // pred_region
          %113 = dma.done %s106, 256
        $region28: #{tpu_custom_call.1} parent=23 // pred_fallthru
          _
        %s114 = sand.u32 %s24, 1
        %s115 = scalar_lea.sflag [#allocation3], %s114
        %s116 = sand.u32 %s24, 1
        %s117 = smul.addr %s116, 16
        %s118 = scalar_lea.vmem [#allocation2], %s117
        %p119 = pneg %p37
        %p120 = pneg %p34
        %p121 = pneg %p58
        %p122 = pneg %p55
        %p123 = scmp.eq.s32.totalorder %s16, 0
        // Predicated region
        $region29: #{tpu_custom_call.1} parent=23 // pred_check
          %p124 = pneg %p123
        $region30: #{tpu_custom_call.1} parent=23 // pred_check_branch
          %126 = sbr.rel (%p124) target = $region32
        $region31: #{tpu_custom_call.1} parent=23 // pred_region
          %s127 = scalar_lea.smem [#allocation5], 0
          %128 = sst [smem:[%s127]] 0.0
        $region32: #{tpu_custom_call.1} parent=23 // pred_fallthru
          _
        %v129 = vld [vmem:[%s109] sm:$0xff]
        %v130 = vld [vmem:[%s109 + $0x8] sm:$0xff]
        %133 = vrot.lane.b32.xlu0 %v129, 127
        %v134 = vpop.permute.xlu0 %133
        %135 = vrot.lane.b32.xlu0 %v130, 127
        %v136 = vpop.permute.xlu0 %135
        %139 = vrot.lane.b32.xlu0 %v129, 15
        %v140 = vpop.permute.xlu0 %139
        %141 = vrot.lane.b32.xlu0 %v130, 15
        %v142 = vpop.permute.xlu0 %141
        %vm145 = vcmask 121856
        %v146 = vsel %vm145, %v134, %v140
        %v147 = vsel %vm145, %v136, %v142
        %vm148 = vcmask 1046528
        %v149 = vrot.slane %v129, 1
        %v150 = vrot.slane %v130, 1
        %v151 = vsel %vm148, %v149, %v150
        %v155 = vsel %vm148, %v150, %v149
        %v158 = vrot.slane %v146, 1
        %v159 = vrot.slane %v147, 1
        %v160 = vsel %vm148, %v158, %v159
        %v164 = vsel %vm148, %v159, %v158
        %v165 = vlaneseq
        %v166 = vand.u32 %v165, 127
        %vm167 = vcmp.lt.s32.totalorder %v166, 15
        %v168 = vlaneseq
        %v169 = vshrl.u32 %v168, 7
        %v170 = vadd.s32 %v169, 8
        %vm171 = vcmp.lt.s32.totalorder %v169, 15
        %vm172 = vcmp.lt.s32.totalorder %v170, 15
        %v173 = vsel %vm167, 0.00052083336, 0.0
        %v174 = vsel %vm171, 0.00052083336, 0.0
        %v175 = vsel %vm172, 0.00052083336, 0.0
        %vm176 = vmand %vm167, %vm171
        %vm177 = vmand %vm167, %vm172
        %v178 = vsel %vm176, 0.00055555557, 0.0
        %v179 = vsel %vm177, 0.00055555557, 0.0
        %v180 = vsub.f32 %v129, %v146
        %v181 = vsub.f32 %v130, %v147
        %v182 = vand.u32 2147483647, %v180
        %v183 = vand.u32 2147483647, %v181
        %v184 = vmul.f32 %v182, %v173
        %v185 = vmul.f32 %v183, %v173
        %v186 = vsub.f32 %v129, %v151
        %v187 = vsub.f32 %v130, %v155
        %v188 = vand.u32 2147483647, %v186
        %v189 = vand.u32 2147483647, %v187
        %v190 = vmul.f32 %v188, %v174
        %v191 = vmul.f32 %v189, %v175
        %v192 = vadd.f32 %v184, %v190
        %v193 = vadd.f32 %v185, %v191
        %v194 = vsub.f32 %v129, %v160
        %v195 = vsub.f32 %v130, %v164
        %v196 = vand.u32 2147483647, %v194
        %v197 = vand.u32 2147483647, %v195
        %v198 = vsub.f32 %v151, %v146
        %v199 = vsub.f32 %v155, %v147
        %v200 = vand.u32 2147483647, %v198
        %v201 = vand.u32 2147483647, %v199
        %v202 = vadd.f32 %v196, %v200
        %v203 = vadd.f32 %v197, %v201
        %v204 = vmul.f32 %v202, %v178
        %v205 = vmul.f32 %v203, %v179
        %v206 = vadd.f32 %v192, %v204
        %v207 = vadd.f32 %v193, %v205
        %s208 = sld [smem:[#allocation5]]
        %vm209 = vcmask 130048
        %v210 = vsel %vm209, %v206, 0.0
        %v211 = vsel %vm209, %v207, 0.0
        %v212 = vadd.f32 %v210, %v211
        %213 = vadd.xlane.f32.xlu0 %v212
        %v214 = vpop.xlane.xlu0 %213
        %v215 = vrot.slane %v214, 4
        %v216 = vadd.f32 %v214, %v215
        %v217 = vrot.slane %v216, 2
        %v218 = vadd.f32 %v216, %v217
        %v219 = vrot.slane %v218, 1
        %v220 = vadd.f32 %v218, %v219
        %s221 = vtos %v220
        %s222 = sadd.f32 %s208, %s221
        %s223 = scalar_lea.smem [#allocation5], 0
        %224 = sst [smem:[%s223]] %s222
        // Predicated region
        $region33: #{tpu_custom_call.1} parent=23 // pred_check
          %p225 = pneg %p55
        $region34: #{tpu_custom_call.1} parent=23 // pred_check_branch
          %227 = sbr.rel (%p225) target = $region36
        $region35: #{tpu_custom_call.1} parent=23 // pred_region
          %s229 = ssub.s32 16, 16
          %230 = vsyncadd [#allocation4], %s229
          %233 = dma.smem_to_hbm [#allocation5], 16, %s1, [#allocation4]
        $region36: #{tpu_custom_call.1} parent=23 // pred_fallthru
          _
        // Predicated region
        $region37: #{tpu_custom_call.1} parent=23 // pred_check
          %p234 = pneg %p55
        $region38: #{tpu_custom_call.1} parent=23 // pred_check_branch
          %236 = sbr.rel (%p234) target = $region40
        $region39: #{tpu_custom_call.1} parent=23 // pred_region
          %237 = dma.done [#allocation4], 16
        $region40: #{tpu_custom_call.1} parent=23 // pred_fallthru
          _
        %238 = sfence
      $region24: #{tpu_custom_call.1} parent=5 // pred_fallthru
        _
      %p239 = scmp.le.s32.totalorder 2, %s11
      // Predicated region
      $region41: #{tpu_custom_call.1} parent=5 // pred_check
        %p240 = pneg %p239
      $region42: #{tpu_custom_call.1} parent=5 // pred_check_branch
        %242 = sbr.rel (%p240) target = $region44
      $region43: #{tpu_custom_call.1} parent=5 // pred_region
        %s243 = ssub.s32 %s11, 2
      $region44: #{tpu_custom_call.1} parent=5 // pred_fallthru
        _
    $region6: #{tpu_custom_call.1} parent=1 // loop_footer
      %s15 = sadd.s32 1, %s11
    $region7: #{tpu_custom_call.1} parent=1 // loop_footer_branch
      %10 = sbr.rel target = $region3
    $region8: #{tpu_custom_call.1} parent=1 // loop_exit
      _
    %244 = vsyncpa [#allocation3], 1
    %s245 = scalar_lea.sflag [#allocation3], 1
    %246 = vsyncpa %s245, 1
    %247 = vsyncpa [#allocation4], 1
    %s248 = scalar_lea.sflag [#allocation4], 1
    %249 = vsyncpa %s248, 1

</llo_original>
